<compile_context>
chip_gen: v7x
topology: tpu7x:2x2x1
jax: 0.10.0
libtpu: 0.0.40
codegen_flags: <defaults>
</compile_context>

<pallas_src>
import math

import jax
import jax.numpy as jnp
from jax.experimental import pallas as pl
from jax.experimental.pallas import tpu as pltpu


_INV_SQRT2 = 1.0 / math.sqrt(2.0)


def _gelu_exact(x):
    # PyTorch nn.GELU() default: 0.5 * x * (1 + erf(x / sqrt(2)))
    return 0.5 * x * (1.0 + jax.lax.erf(x * _INV_SQRT2))


def _round_up(x, m):
    return ((x + m - 1) // m) * m


def _round_down_floor(x, m):
    return max(m, (x // m) * m)


# --------------------------------- kernels ----------------------------------

def ffn_fast_kernel(x_ref, w1_ref, b1_ref, w2_ref, b2_ref, o_ref):
    """Weights fully VMEM-resident. 1-D grid over row tiles; no reduction axis."""
    h = jnp.dot(x_ref[...], w1_ref[...], preferred_element_type=jnp.float32)
    h = _gelu_exact(h + b1_ref[...].astype(jnp.float32))
    y = jnp.dot(h.astype(w2_ref.dtype), w2_ref[...],
                preferred_element_type=jnp.float32)
    o_ref[...] = (y + b2_ref[...].astype(jnp.float32)).astype(o_ref.dtype)


def ffn_tiled_kernel(x_ref, w1_ref, b1_ref, w2_ref, b2_ref, o_ref, acc_ref):
    """Grid = (row_tiles, hidden_tiles). Hidden axis is the reduction axis."""
    k = pl.program_id(1)

    # First matmul on this hidden slice: (tm, C) @ (C, th), f32 accumulate.
    h = jnp.dot(x_ref[...], w1_ref[...], preferred_element_type=jnp.float32)
    h = _gelu_exact(h + b1_ref[...].astype(jnp.float32))

    # Second matmul slice: (tm, th) @ (th, C), accumulated across hidden tiles.
    partial = jnp.dot(h.astype(w2_ref.dtype), w2_ref[...],
                      preferred_element_type=jnp.float32)

    @pl.when(k == 0)
    def _first():
        acc_ref[...] = partial          # direct write: no zero-init + += on k==0

    @pl.when(k > 0)
    def _accum():
        acc_ref[...] += partial

    @pl.when(k == pl.num_programs(1) - 1)
    def _finalize():
        y = acc_ref[...] + b2_ref[...].astype(jnp.float32)
        o_ref[...] = y.astype(o_ref.dtype)


# ------------------------------ tile planning --------------------------------

def _vmem_budget_bytes():
    cap = 128 << 20
    try:
        info = pltpu.get_tpu_info()
        cap = int(getattr(info, "vmem_capacity_bytes", cap))
    except Exception:
        pass
    # ~75% of physical VMEM: 96 MiB on v5e/v6e (128 MiB), 48 MiB on v7x (64 MiB).
    return int(cap * 3 // 4)


def _row_align(itemsize):
    # sublane packing: f32 -> 8 rows/vreg, bf16 -> 16, int8/fp8 -> 32
    if itemsize >= 4:
        return 8
    if itemsize == 2:
        return 16
    return 32


def _fast_vmem_bytes(tm, C, H, in_b, out_b):
    weights = 2 * 2 * C * H * in_b            # W1 & W2 (worst case double-buffered)
    biases = 2 * (H + C) * in_b
    io = 2 * tm * C * (in_b + out_b)          # x / out tiles, double-buffered
    hidden = 2 * tm * H * 4                   # f32 hidden intermediate + slack
    return weights + biases + io + hidden


def _tiled_vmem_bytes(tm, th, C, in_b, out_b):
    weights = 2 * 2 * C * th * in_b           # W1 & W2 slices, double-buffered
    biases = 2 * (th + C) * in_b
    io = 2 * tm * C * (in_b + out_b)
    acc = tm * C * 4
    hidden = 2 * tm * th * 4
    return weights + biases + io + acc + hidden


def _plan(M, C, H, in_b, out_b, tm_req, th_req, budget, allow_fast):
    """Returns (fast_path, tm, th)."""
    align = _row_align(in_b)
    m_aligned = _round_up(M, align)
    tm = min(_round_up(max(tm_req, align), align), m_aligned)

    # ---- Fast path: all weights resident, no hidden reduction axis. ----
    if allow_fast and _fast_vmem_bytes(align, C, H, in_b, out_b) <= budget:
        t = tm
        while t > align and _fast_vmem_bytes(t, C, H, in_b, out_b) > budget:
            t = _round_down_floor(t // 2, align)
        if _fast_vmem_bytes(t, C, H, in_b, out_b) <= budget:
            # Keep >=2 row tiles so the parallel axis shards across v7x's 2 TCs.
            if m_aligned >= 512:
                t = min(t, max(256, ((m_aligned // 2) // 256) * 256))
            return True, t, H

    # ---- Tiled path: stream the hidden dim as the reduction axis. ----
    valid_th = sorted({d for d in range(128, H + 1, 128) if H % d == 0} | {H},
                      reverse=True)
    ti = 0
    want_th = min(th_req, H)
    while ti < len(valid_th) - 1 and valid_th[ti] > want_th:
        ti += 1
    th = valid_th[ti]

    tm_floor = min(256, m_aligned)
    while _tiled_vmem_bytes(tm, th, C, in_b, out_b) > budget:
        if ti < len(valid_th) - 1:
            ti += 1                     # shrink th first (any 128-multiple divisor)
            th = valid_th[ti]
        elif tm > tm_floor:
            tm = max(tm_floor, _round_down_floor(tm // 2, align))
        else:
            break

    # Megacore split only when tm stays large enough to remain MXU-friendly.
    if m_aligned >= 1024 and tm >= 1024:
        tm = min(tm, max(512, ((m_aligned // 2) // 256) * 256))
    return False, tm, th


# --------------------------------- wrapper -----------------------------------

def feed_forward(x, w1, b1, w2, b2, *, tm=1024, th=512, allow_fast=True):
    """x: (B, S, C); w1: (C, 4C); b1: (4C,); w2: (4C, C); b2: (C,)."""
    B, S, C = x.shape
    H = w1.shape[1]
    M = B * S

    in_bytes = jnp.dtype(x.dtype).itemsize
    out_bytes = in_bytes
    budget = _vmem_budget_bytes()
    fast, tm_eff, th_eff = _plan(M, C, H, in_bytes, out_bytes, tm, th, budget,
                                 allow_fast)

    x2d = x.reshape(M, C)
    M_pad = _round_up(M, tm_eff)
    if M_pad != M:
        x2d = jnp.pad(x2d, ((0, M_pad - M), (0, 0)))

    b1_2d = b1.reshape(1, H)
    b2_2d = b2.reshape(1, C)

    num_row_tiles = M_pad // tm_eff
    weight_reads = 1 if fast else num_row_tiles   # actual re-streaming of W1/W2
    cost = pl.CostEstimate(
        flops=2 * 2 * M_pad * C * H,              # two matmuls
        transcendentals=M_pad * H,                # erf per hidden activation
        bytes_accessed=(M_pad * C * in_bytes                    # x
                        + weight_reads * C * H * in_bytes       # W1
                        + H * in_bytes                          # b1
                        + weight_reads * H * C * in_bytes       # W2
                        + C * in_bytes                          # b2
                        + M_pad * C * out_bytes),               # y
    )

    if fast:
        grid = (num_row_tiles,)
        in_specs = [
            pl.BlockSpec((tm_eff, C), lambda i: (i, 0)),   # x row tile
            pl.BlockSpec((C, H), lambda i: (0, 0)),        # W1 (VMEM-resident)
            pl.BlockSpec((1, H), lambda i: (0, 0)),        # b1
            pl.BlockSpec((H, C), lambda i: (0, 0)),        # W2 (VMEM-resident)
            pl.BlockSpec((1, C), lambda i: (0, 0)),        # b2
        ]
        out_specs = pl.BlockSpec((tm_eff, C), lambda i: (i, 0))
        scratch_shapes = []
        kernel = ffn_fast_kernel
        dim_sem = ("parallel",)
    else:
        grid = (num_row_tiles, H // th_eff)
        in_specs = [
            pl.BlockSpec((tm_eff, C), lambda i, k: (i, 0)),    # x row tile
            pl.BlockSpec((C, th_eff), lambda i, k: (0, k)),    # W1 slice
            pl.BlockSpec((1, th_eff), lambda i, k: (0, k)),    # b1 slice
            pl.BlockSpec((th_eff, C), lambda i, k: (k, 0)),    # W2 slice
            pl.BlockSpec((1, C), lambda i, k: (0, 0)),         # b2
        ]
        out_specs = pl.BlockSpec((tm_eff, C), lambda i, k: (i, 0))
        scratch_shapes = [pltpu.VMEM((tm_eff, C), jnp.float32)]
        kernel = ffn_tiled_kernel
        dim_sem = ("parallel", "arbitrary")

    out2d = pl.pallas_call(
        kernel,
        out_shape=jax.ShapeDtypeStruct((M_pad, C), x.dtype),
        grid_spec=pltpu.PrefetchScalarGridSpec(
            num_scalar_prefetch=0,
            grid=grid,
            in_specs=in_specs,
            out_specs=out_specs,
            scratch_shapes=scratch_shapes,
        ),
        compiler_params=pltpu.CompilerParams(
            dimension_semantics=dim_sem,
            vmem_limit_bytes=budget,
        ),
        cost_estimate=cost,
    )(x2d, w1, b1_2d, w2, b2_2d)

    return out2d[:M].reshape(B, S, C)


# ------------------------------- reference/test -------------------------------

def feed_forward_ref(x, w1, b1, w2, b2):
    h = jnp.einsum("bsc,ch->bsh", x, w1) + b1
    h = _gelu_exact(h)
    return jnp.einsum("bsh,hc->bsc", h, w2) + b2


def _make_params(key, n_embd, dtype=jnp.float32):
    hidden = 4 * n_embd
    k_w1, k_b1, k_w2, k_b2 = jax.random.split(key, 4)
    lim1 = 1.0 / math.sqrt(n_embd)
    lim2 = 1.0 / math.sqrt(hidden)
    w1 = jax.random.uniform(k_w1, (n_embd, hidden), dtype, -lim1, lim1)
    b1 = jax.random.uniform(k_b1, (hidden,), dtype, -lim1, lim1)
    w2 = jax.random.uniform(k_w2, (hidden, n_embd), dtype, -lim2, lim2)
    b2 = jax.random.uniform(k_b2, (n_embd,), dtype, -lim2, lim2)
    return w1, b1, w2, b2


if __name__ == "__main__":
    key = jax.random.PRNGKey(0)
    k0, k1, k2, k3, k4 = jax.random.split(key, 5)

    # Case 1: tiny shapes consistent with the module (B=2, S=8, n_embd=32).
    # Exercises the weights-resident fast path with a single row tile.
    B, S, C = 2, 8, 32
    w1, b1, w2, b2 = _make_params(k1, C)
    x = jax.random.normal(k0, (B, S, C), dtype=jnp.float32)
    out = jax.block_until_ready(feed_forward(x, w1, b1, w2, b2))
    ref = feed_forward_ref(x, w1, b1, w2, b2)
    assert out.shape == (B, S, C)
    assert jnp.allclose(out, ref, atol=1e-5, rtol=1e-5), "case 1 mismatch"

    # Case 2: row count not divisible by the row tile (exercises padding path).
    B2, S2 = 2, 7
    x2 = jax.random.normal(k2, (B2, S2, C), dtype=jnp.float32)
    out2 = jax.block_until_ready(feed_forward(x2, w1, b1, w2, b2))
    ref2 = feed_forward_ref(x2, w1, b1, w2, b2)
    assert out2.shape == (B2, S2, C)
    assert jnp.allclose(out2, ref2, atol=1e-5, rtol=1e-5), "case 2 mismatch"

    # Case 3: hidden-tiled reduction path (forced) with multi-step row + hidden
    # tiling; exercises the f32 accumulator, k==0 direct write and finalize.
    B3, S3, C3 = 2, 64, 128
    w1b, b1b, w2b, b2b = _make_params(k3, C3)
    x3 = jax.random.normal(k2, (B3, S3, C3), dtype=jnp.float32)
    out3 = jax.block_until_ready(
        feed_forward(x3, w1b, b1b, w2b, b2b, tm=64, th=128, allow_fast=False))
    ref3 = feed_forward_ref(x3, w1b, b1b, w2b, b2b)
    assert out3.shape == (B3, S3, C3)
    assert jnp.allclose(out3, ref3, atol=1e-4, rtol=1e-5), "case 3 mismatch"

    # Case 4: bf16 fast path with >=2 row tiles on the parallel axis
    # (mixed-precision MXU path; tolerance accounts for bf16 intermediates).
    B4, S4, C4 = 2, 256, 128
    w1c, b1c, w2c, b2c = _make_params(k4, C4, dtype=jnp.bfloat16)
    x4 = jax.random.normal(k0, (B4, S4, C4), dtype=jnp.bfloat16)
    out4 = jax.block_until_ready(feed_forward(x4, w1c, b1c, w2c, b2c))
    ref4 = feed_forward_ref(x4.astype(jnp.float32), w1c.astype(jnp.float32),
                            b1c.astype(jnp.float32), w2c.astype(jnp.float32),
                            b2c.astype(jnp.float32))
    assert out4.shape == (B4, S4, C4)
    max_err = float(jnp.max(jnp.abs(out4.astype(jnp.float32) - ref4)))
    assert max_err < 5e-2, f"case 4 mismatch, max err {max_err}"

    print("KERNEL_OK")
</pallas_src>

<mosaic_0001>
module attributes {stable_mosaic.version = 11 : i64} {
  func.func @ffn_fast_kernel(%arg0: i32, %arg1: memref<16x32xf32, #tpu.memory_space<vmem>>, %arg2: memref<32x128xf32, #tpu.memory_space<vmem>>, %arg3: memref<1x128xf32, #tpu.memory_space<vmem>>, %arg4: memref<128x32xf32, #tpu.memory_space<vmem>>, %arg5: memref<1x32xf32, #tpu.memory_space<vmem>>, %arg6: memref<16x32xf32, #tpu.memory_space<vmem>>) attributes {dimension_semantics = [#tpu.dimension_semantics<parallel>], iteration_bounds = array<i64: 1>, scalar_prefetch = 0 : i64, scratch_operands = 0 : i64, tpu.core_type = #tpu.core_type<tc>, window_params = [{transform_indices = @transform_0, window_bounds = array<i64: 16, 32>}, {pipeline_mode = #tpu.pipeline_mode<synchronous>, transform_indices = @transform_1, window_bounds = array<i64: 32, 128>}, {pipeline_mode = #tpu.pipeline_mode<synchronous>, transform_indices = @transform_2, window_bounds = array<i64: 1, 128>}, {pipeline_mode = #tpu.pipeline_mode<synchronous>, transform_indices = @transform_3, window_bounds = array<i64: 128, 32>}, {pipeline_mode = #tpu.pipeline_mode<synchronous>, transform_indices = @transform_4, window_bounds = array<i64: 1, 32>}, {transform_indices = @transform_5, window_bounds = array<i64: 16, 32>}]} {
    %c0 = arith.constant 0 : index
    %c0_0 = arith.constant 0 : index
    %0 = vector.load %arg1[%c0, %c0_0] : memref<16x32xf32, #tpu.memory_space<vmem>>, vector<16x32xf32>
    %c0_1 = arith.constant 0 : index
    %c0_2 = arith.constant 0 : index
    %1 = vector.load %arg2[%c0_1, %c0_2] : memref<32x128xf32, #tpu.memory_space<vmem>>, vector<32x128xf32>
    %cst = arith.constant dense<0.000000e+00> : vector<16x128xf32>
    %2 = tpu.matmul %0, %1, %cst {dimension_numbers = #tpu.dot_dimension_numbers<[1], [0], [0], [1], [0, 0, 1, 1], [], []>} : vector<16x32xf32>, vector<32x128xf32>, vector<16x128xf32> -> vector<16x128xf32>
    %c0_3 = arith.constant 0 : index
    %c0_4 = arith.constant 0 : index
    %3 = vector.load %arg3[%c0_3, %c0_4] : memref<1x128xf32, #tpu.memory_space<vmem>>, vector<1x128xf32>
    %4 = vector.broadcast %3 : vector<1x128xf32> to vector<16x128xf32>
    %5 = arith.addf %2, %4 : vector<16x128xf32>
    %cst_5 = arith.constant 5.000000e-01 : f32
    %6 = vector.broadcast %cst_5 : f32 to vector<16x128xf32>
    %7 = arith.mulf %6, %5 : vector<16x128xf32>
    %cst_6 = arith.constant 0.707106769 : f32
    %8 = vector.broadcast %cst_6 : f32 to vector<16x128xf32>
    %9 = arith.mulf %5, %8 : vector<16x128xf32>
    %10 = math.erf %9 : vector<16x128xf32>
    %cst_7 = arith.constant 1.000000e+00 : f32
    %11 = vector.broadcast %cst_7 : f32 to vector<16x128xf32>
    %12 = arith.addf %11, %10 : vector<16x128xf32>
    %13 = arith.mulf %7, %12 : vector<16x128xf32>
    %c0_8 = arith.constant 0 : index
    %c0_9 = arith.constant 0 : index
    %14 = vector.load %arg4[%c0_8, %c0_9] : memref<128x32xf32, #tpu.memory_space<vmem>>, vector<128x32xf32>
    %cst_10 = arith.constant dense<0.000000e+00> : vector<16x32xf32>
    %15 = tpu.matmul %13, %14, %cst_10 {dimension_numbers = #tpu.dot_dimension_numbers<[1], [0], [0], [1], [0, 0, 1, 1], [], []>} : vector<16x128xf32>, vector<128x32xf32>, vector<16x32xf32> -> vector<16x32xf32>
    %c0_11 = arith.constant 0 : index
    %c0_12 = arith.constant 0 : index
    %16 = vector.load %arg5[%c0_11, %c0_12] : memref<1x32xf32, #tpu.memory_space<vmem>>, vector<1x32xf32>
    %17 = vector.broadcast %16 : vector<1x32xf32> to vector<16x32xf32>
    %18 = arith.addf %15, %17 : vector<16x32xf32>
    %c0_13 = arith.constant 0 : index
    %c0_14 = arith.constant 0 : index
    %19 = vector.load %arg6[%c0_13, %c0_14] : memref<16x32xf32, #tpu.memory_space<vmem>>, vector<16x32xf32>
    tpu.vector_store %arg6[%c0_13, %c0_14], %18 {strides = array<i32>} : memref<16x32xf32, #tpu.memory_space<vmem>>, vector<16x32xf32>,
    return
  }
  func.func @transform_0(%arg0: i32) -> (i32, i32) {
    %c0_i32 = arith.constant 0 : i32
    %c0_i32_0 = arith.constant 0 : i32
    return %arg0, %c0_i32 : i32, i32
  }
  func.func @transform_1(%arg0: i32) -> (i32, i32) {
    %c0_i32 = arith.constant 0 : i32
    %c0_i32_0 = arith.constant 0 : i32
    %c0_i32_1 = arith.constant 0 : i32
    return %c0_i32, %c0_i32_0 : i32, i32
  }
  func.func @transform_2(%arg0: i32) -> (i32, i32) {
    %c0_i32 = arith.constant 0 : i32
    %c0_i32_0 = arith.constant 0 : i32
    %c0_i32_1 = arith.constant 0 : i32
    return %c0_i32, %c0_i32_0 : i32, i32
  }
  func.func @transform_3(%arg0: i32) -> (i32, i32) {
    %c0_i32 = arith.constant 0 : i32
    %c0_i32_0 = arith.constant 0 : i32
    %c0_i32_1 = arith.constant 0 : i32
    return %c0_i32, %c0_i32_0 : i32, i32
  }
  func.func @transform_4(%arg0: i32) -> (i32, i32) {
    %c0_i32 = arith.constant 0 : i32
    %c0_i32_0 = arith.constant 0 : i32
    %c0_i32_1 = arith.constant 0 : i32
    return %c0_i32, %c0_i32_0 : i32, i32
  }
  func.func @transform_5(%arg0: i32) -> (i32, i32) {
    %c0_i32 = arith.constant 0 : i32
    %c0_i32_0 = arith.constant 0 : i32
    return %arg0, %c0_i32 : i32, i32
  }
}

</mosaic_0001>

<llo_original>
// kernel: tpu_custom_call.1
$region0: #{tpu_custom_call.1}
  #allocation0 [shape = 'u32[]', space=smem, size = 0x4, offset = 0x4, fixed_abs, tag = 'smem constant byte address 0x4 - core index']
  #allocation1 [shape = 'u32[144,128]{1,0:T(1,128)}', space=vmem, size = 0x12000, scoped, tag = 'internal scratch']
  %s0 = inlined_call_operand.hbm [shape: f32[16,32], index: 0, kind: input, shape index: {}]
  %s1 = inlined_call_operand.hbm [shape: f32[32,128], index: 1, kind: input, shape index: {}]
  %s2 = inlined_call_operand.hbm [shape: f32[1,128], index: 2, kind: input, shape index: {}]
  %s3 = inlined_call_operand.hbm [shape: f32[128,32], index: 3, kind: input, shape index: {}]
  %s4 = inlined_call_operand.hbm [shape: f32[1,32], index: 4, kind: input, shape index: {}]
  %s5 = inlined_call_operand.hbm [shape: f32[16,32], index: 5, kind: output, shape index: {}]
  %s6 = sld [smem:[#allocation0]]
  $region50: #{tpu_custom_call.1} parent=0
    _
  %s8 = ssub.s32 1, %s6
  %s9 = scalar_select 0, %s8, %s6
  $region1: #{tpu_custom_call.1} parent=0
    #allocation2 [shape = 'u8[8192]{0}', space=vmem, size = 0x2000, scoped, tag = 'input window, operand 0, single buffered']
    #allocation3 [shape = 's32[1]{0}', space=sflag, size = 0x4, scoped, tag = 'scoped memory for tpu_custom_call.1']
    #allocation4 [shape = 's32[1]{0}', space=sflag, size = 0x4, scoped, tag = 'scoped memory for tpu_custom_call.1']
    #allocation5 [shape = 'u8[16384]{0}', space=vmem, size = 0x4000, scoped, tag = 'input window, operand 1, single buffered']
    #allocation6 [shape = 's32[1]{0}', space=sflag, size = 0x4, scoped, tag = 'scoped memory for tpu_custom_call.1']
    #allocation7 [shape = 'u8[512]{0}', space=vmem, size = 0x400, scoped, tag = 'input window, operand 2, single buffered']
    #allocation8 [shape = 'u8[65536]{0}', space=vmem, size = 0x10000, scoped, tag = 'input window, operand 3, single buffered']
    #allocation9 [shape = 's32[1]{0}', space=sflag, size = 0x4, scoped, tag = 'scoped memory for tpu_custom_call.1']
    #allocation10 [shape = 'u8[512]{0}', space=vmem, size = 0x400, scoped, tag = 'input window, operand 4, single buffered']
    #allocation11 [shape = 'u8[8192]{0}', space=vmem, size = 0x2000, scoped, tag = 'output window, operand 0, single buffered']
    %10 = vsyncpa [#allocation3], 0
    %11 = vsyncpa [#allocation6], 0
    %12 = vsyncpa [#allocation9], 0
    %13 = vsyncpa [#allocation4], 0
    // Predicated region
    $region2: #{tpu_custom_call.1} parent=1 // pred_check
      _
    $region3: #{tpu_custom_call.1} parent=1 // pred_check_branch
      %15 = sbr.rel (0) target = $region5
    $region4: #{tpu_custom_call.1} parent=1 // pred_region
      %s17 = ssub.s32 256, 256
      %18 = vsyncadd [#allocation3], %s17
      %s19 = sshll.u32 [#allocation2], 4
      %s20 = int_to_ptr.vmem [resolvable:$true] %s19
      %25 = dma.hbm_to_vmem [thread:$0]  %s0, 256, %s20, [#allocation3], 128, 128, 8
    $region5: #{tpu_custom_call.1} parent=1 // pred_fallthru
      _
    // Predicated region
    $region6: #{tpu_custom_call.1} parent=1 // pred_check
      _
    $region7: #{tpu_custom_call.1} parent=1 // pred_check_branch
      %27 = sbr.rel (0) target = $region9
    $region8: #{tpu_custom_call.1} parent=1 // pred_region
      %s29 = ssub.s32 512, 512
      %30 = vsyncadd [#allocation6], %s29
      %s31 = sshll.u32 [#allocation5], 4
      %s32 = int_to_ptr.vmem [resolvable:$true] %s31
      %37 = dma.hbm_to_vmem [thread:$0]  %s1, 512, %s32, [#allocation6], 128, 128, 8
    $region9: #{tpu_custom_call.1} parent=1 // pred_fallthru
      _
    // Predicated region
    $region10: #{tpu_custom_call.1} parent=1 // pred_check
      _
    $region11: #{tpu_custom_call.1} parent=1 // pred_check_branch
      %39 = sbr.rel (0) target = $region13
    $region12: #{tpu_custom_call.1} parent=1 // pred_region
      %s41 = ssub.s32 16, 16
      %42 = vsyncadd [#allocation6], %s41
      %s44 = sshll.u32 [#allocation7], 4
      %s45 = int_to_ptr.vmem [resolvable:$true] %s44
      %47 = dma.hbm_to_vmem [thread:$0]  %s2, 16, %s45, [#allocation6]
    $region13: #{tpu_custom_call.1} parent=1 // pred_fallthru
      _
    // Predicated region
    $region14: #{tpu_custom_call.1} parent=1 // pred_check
      _
    $region15: #{tpu_custom_call.1} parent=1 // pred_check_branch
      %49 = sbr.rel (0) target = $region17
    $region16: #{tpu_custom_call.1} parent=1 // pred_region
      %s51 = ssub.s32 2048, 2048
      %52 = vsyncadd [#allocation9], %s51
      %s53 = sshll.u32 [#allocation8], 4
      %s54 = int_to_ptr.vmem [resolvable:$true] %s53
      %59 = dma.hbm_to_vmem [thread:$0]  %s3, 2048, %s54, [#allocation9], 128, 128, 8
    $region17: #{tpu_custom_call.1} parent=1 // pred_fallthru
      _
    // Predicated region
    $region18: #{tpu_custom_call.1} parent=1 // pred_check
      _
    $region19: #{tpu_custom_call.1} parent=1 // pred_check_branch
      %61 = sbr.rel (0) target = $region21
    $region20: #{tpu_custom_call.1} parent=1 // pred_region
      %s63 = ssub.s32 16, 16
      %64 = vsyncadd [#allocation9], %s63
      %s66 = sshll.u32 [#allocation10], 4
      %s67 = int_to_ptr.vmem [resolvable:$true] %s66
      %69 = dma.hbm_to_vmem [thread:$0]  %s4, 16, %s67, [#allocation9]
    $region21: #{tpu_custom_call.1} parent=1 // pred_fallthru
      _
    // Predicated region
    $region22: #{tpu_custom_call.1} parent=1 // pred_check
      _
    $region23: #{tpu_custom_call.1} parent=1 // pred_check_branch
      %71 = sbr.rel (0) target = $region25
    $region24: #{tpu_custom_call.1} parent=1 // pred_region
      %72 = dma.done [#allocation3], 256
    $region25: #{tpu_custom_call.1} parent=1 // pred_fallthru
      _
    // Predicated region
    $region26: #{tpu_custom_call.1} parent=1 // pred_check
      _
    $region27: #{tpu_custom_call.1} parent=1 // pred_check_branch
      %74 = sbr.rel (0) target = $region29
    $region28: #{tpu_custom_call.1} parent=1 // pred_region
      %75 = dma.done [#allocation6], 512
    $region29: #{tpu_custom_call.1} parent=1 // pred_fallthru
      _
    // Predicated region
    $region30: #{tpu_custom_call.1} parent=1 // pred_check
      _
    $region31: #{tpu_custom_call.1} parent=1 // pred_check_branch
      %77 = sbr.rel (0) target = $region33
    $region32: #{tpu_custom_call.1} parent=1 // pred_region
      %78 = dma.done [#allocation6], 16
    $region33: #{tpu_custom_call.1} parent=1 // pred_fallthru
      _
    // Predicated region
    $region34: #{tpu_custom_call.1} parent=1 // pred_check
      _
    $region35: #{tpu_custom_call.1} parent=1 // pred_check_branch
      %80 = sbr.rel (0) target = $region37
    $region36: #{tpu_custom_call.1} parent=1 // pred_region
      %81 = dma.done [#allocation9], 2048
    $region37: #{tpu_custom_call.1} parent=1 // pred_fallthru
      _
    // Predicated region
    $region38: #{tpu_custom_call.1} parent=1 // pred_check
      _
    $region39: #{tpu_custom_call.1} parent=1 // pred_check_branch
      %83 = sbr.rel (0) target = $region41
    $region40: #{tpu_custom_call.1} parent=1 // pred_region
      %84 = dma.done [#allocation9], 16
    $region41: #{tpu_custom_call.1} parent=1 // pred_fallthru
      _
    %v85 = vld [vmem:[#allocation2] sm:$0xff]
    %v86 = vld [vmem:[#allocation2 + $0x8] sm:$0xff]
    %v87 = vld [vmem:[#allocation5] sm:$0xff]
    %v88 = vld [vmem:[#allocation5 + $0x8] sm:$0xff]
    %v89 = vld [vmem:[#allocation5 + $0x10] sm:$0xff]
    %v90 = vld [vmem:[#allocation5 + $0x18] sm:$0xff]
    %v91 = vld [vmem:[#allocation7] sm:$0x1]
    %v93 = vlaneseq
    %v94 = vshrl.u32 %v93, 7
    %v95 = vsub.s32 0, %v94
    %v96 = vrot.slane %v91, %v95
    %vm98 = vcmask 261120
    %v100 = vsel %vm98, %v85, 0
    %v103 = vsel %vm98, %v86, 0
    %105 = vmatprep.subr.mxu0 0.0
    %106 = vmatpush1.msra.mxu0 %v87
    %107 = vmatprep.subr.mxu0 0.0
    %108 = vmatpush1.msra.mxu0 %v88
    %109 = vmatprep.subr.mxu0 0.0
    %110 = vmatpush1.msra.mxu0 %v89
    %111 = vmatprep.subr.mxu0 0.0
    %112 = vmatpush1.msra.mxu0 %v90
    %113 = vmatprep.subr.mxu0 0.0
    %114 = vmatpush1.msra.mxu0 0.0
    %115 = vmatprep.subr.mxu0 0.0
    %116 = vmatpush1.msra.mxu0 0.0
    %117 = vmatprep.subr.mxu0 0.0
    %118 = vmatpush1.msra.mxu0 0.0
    %119 = vmatprep.subr.mxu0 0.0
    %120 = vmatpush1.msra.mxu0 0.0
    %121 = vmatprep.subr.mxu0 0.0
    %122 = vmatpush1.msra.mxu0 0.0
    %123 = vmatprep.subr.mxu0 0.0
    %124 = vmatpush1.msra.mxu0 0.0
    %125 = vmatprep.subr.mxu0 0.0
    %126 = vmatpush1.msra.mxu0 0.0
    %127 = vmatprep.subr.mxu0 0.0
    %128 = vmatpush1.msra.mxu0 0.0
    %129 = vmatprep.subr.mxu0 0.0
    %130 = vmatpush1.msra.mxu0 0.0
    %131 = vmatprep.subr.mxu0 0.0
    %132 = vmatpush1.msra.mxu0 0.0
    %133 = vmatprep.subr.mxu0 0.0
    %134 = vmatpush1.msra.mxu0 0.0
    %135 = vmatprep.subr.mxu0 0.0
    %136 = vmatpush1.msra.mxu0 0.0
    %137 = vmatprep.subr.mxu0 0.0
    %138 = vmatpush1.msra.mxu0 0.0
    %139 = vmatprep.subr.mxu0 0.0
    %140 = vmatpush1.msra.mxu0 0.0
    %141 = vmatprep.subr.mxu0 0.0
    %142 = vmatpush1.msra.mxu0 0.0
    %143 = vmatprep.subr.mxu0 0.0
    %144 = vmatpush1.msra.mxu0 0.0
    %145 = vmatprep.subr.mxu0 0.0
    %146 = vmatpush1.msra.mxu0 0.0
    %147 = vmatprep.subr.mxu0 0.0
    %148 = vmatpush1.msra.mxu0 0.0
    %149 = vmatprep.subr.mxu0 0.0
    %150 = vmatpush1.msra.mxu0 0.0
    %151 = vmatprep.subr.mxu0 0.0
    %152 = vmatpush1.msra.mxu0 0.0
    %153 = vmatprep.subr.mxu0 0.0
    %154 = vmatpush1.msra.mxu0 0.0
    %155 = vmatprep.subr.mxu0 0.0
    %156 = vmatpush1.msra.mxu0 0.0
    %157 = vmatprep.subr.mxu0 0.0
    %158 = vmatpush1.msra.mxu0 0.0
    %159 = vmatprep.subr.mxu0 0.0
    %160 = vmatpush1.msra.mxu0 0.0
    %161 = vmatprep.subr.mxu0 0.0
    %162 = vmatpush1.msra.mxu0 0.0
    %163 = vmatprep.subr.mxu0 0.0
    %164 = vmatpush1.msra.mxu0 0.0
    %165 = vmatprep.subr.mxu0 0.0
    %166 = vmatpush1.msra.mxu0 0.0
    %167 = vmatprep.subr.mxu0 0.0
    %168 = vmatpush1.msra.mxu0 0.0
    %169 = vmatprep.mubr.f32.mxu0 0.0
    %170 = vmatmul.mubr.f32.gmra.mrb[0].mxu0 %v100
    %v171 = vpop.f32.mrb[0].mxu0
    %v172 = vadd.f32 %v96, %v171
    %v173 = vpop.f32.mrb[0].mxu0
    %174 = vmatprep.mubr.f32.mxu0 0.0
    %175 = vmatmul.mubr.f32.gmra.mrb[0].mxu0 %v103
    %v176 = vpop.f32.mrb[0].mxu0
    %v177 = vadd.f32 %v96, %v176
    %v178 = vpop.f32.mrb[0].mxu0
    %179 = vdwg.mxu0
    %v180 = vmul.f32 %v172, 0.5
    %v181 = vmul.f32 %v177, 0.5
    %v182 = vmul.f32 %v172, 0.70710677
    %v183 = vmul.f32 %v177, 0.70710677
    %v184 = verf.f32.pop %v182
    %v185 = verf.f32.pop %v183
    %v186 = vadd.f32 %v184, 1.0
    %v187 = vadd.f32 %v185, 1.0
    %v188 = vmul.f32 %v180, %v186
    %v189 = vmul.f32 %v181, %v187
    %v190 = vld [vmem:[#allocation8] sm:$0xff]
    %v191 = vld [vmem:[#allocation8 + $0x8] sm:$0xff]
    %v192 = vld [vmem:[#allocation8 + $0x10] sm:$0xff]
    %v193 = vld [vmem:[#allocation8 + $0x18] sm:$0xff]
    %v194 = vld [vmem:[#allocation8 + $0x20] sm:$0xff]
    %v195 = vld [vmem:[#allocation8 + $0x28] sm:$0xff]
    %v196 = vld [vmem:[#allocation8 + $0x30] sm:$0xff]
    %v197 = vld [vmem:[#allocation8 + $0x38] sm:$0xff]
    %v198 = vld [vmem:[#allocation8 + $0x40] sm:$0xff]
    %v199 = vld [vmem:[#allocation8 + $0x48] sm:$0xff]
    %v200 = vld [vmem:[#allocation8 + $0x50] sm:$0xff]
    %v201 = vld [vmem:[#allocation8 + $0x58] sm:$0xff]
    %v202 = vld [vmem:[#allocation8 + $0x60] sm:$0xff]
    %v203 = vld [vmem:[#allocation8 + $0x68] sm:$0xff]
    %v204 = vld [vmem:[#allocation8 + $0x70] sm:$0xff]
    %v205 = vld [vmem:[#allocation8 + $0x78] sm:$0xff]
    %v206 = vld [vmem:[#allocation10] sm:$0x1]
    %v208 = vlaneseq
    %v209 = vshrl.u32 %v208, 7
    %v210 = vsub.s32 0, %v209
    %v211 = vrot.slane %v206, %v210
    %213 = vmatprep.subr.mxu0 0.0
    %214 = vmatpush1.msra.mxu0 %v190
    %215 = vmatprep.subr.mxu0 0.0
    %216 = vmatpush1.msra.mxu0 %v191
    %217 = vmatprep.subr.mxu0 0.0
    %218 = vmatpush1.msra.mxu0 %v192
    %219 = vmatprep.subr.mxu0 0.0
    %220 = vmatpush1.msra.mxu0 %v193
    %221 = vmatprep.subr.mxu0 0.0
    %222 = vmatpush1.msra.mxu0 %v194
    %223 = vmatprep.subr.mxu0 0.0
    %224 = vmatpush1.msra.mxu0 %v195
    %225 = vmatprep.subr.mxu0 0.0
    %226 = vmatpush1.msra.mxu0 %v196
    %227 = vmatprep.subr.mxu0 0.0
    %228 = vmatpush1.msra.mxu0 %v197
    %229 = vmatprep.subr.mxu0 0.0
    %230 = vmatpush1.msra.mxu0 %v198
    %231 = vmatprep.subr.mxu0 0.0
    %232 = vmatpush1.msra.mxu0 %v199
    %233 = vmatprep.subr.mxu0 0.0
    %234 = vmatpush1.msra.mxu0 %v200
    %235 = vmatprep.subr.mxu0 0.0
    %236 = vmatpush1.msra.mxu0 %v201
    %237 = vmatprep.subr.mxu0 0.0
    %238 = vmatpush1.msra.mxu0 %v202
    %239 = vmatprep.subr.mxu0 0.0
    %240 = vmatpush1.msra.mxu0 %v203
    %241 = vmatprep.subr.mxu0 0.0
    %242 = vmatpush1.msra.mxu0 %v204
    %243 = vmatprep.subr.mxu0 0.0
    %244 = vmatpush1.msra.mxu0 %v205
    %245 = vmatprep.subr.mxu0 0.0
    %246 = vmatpush1.msra.mxu0 0.0
    %247 = vmatprep.subr.mxu0 0.0
    %248 = vmatpush1.msra.mxu0 0.0
    %249 = vmatprep.subr.mxu0 0.0
    %250 = vmatpush1.msra.mxu0 0.0
    %251 = vmatprep.subr.mxu0 0.0
    %252 = vmatpush1.msra.mxu0 0.0
    %253 = vmatprep.subr.mxu0 0.0
    %254 = vmatpush1.msra.mxu0 0.0
    %255 = vmatprep.subr.mxu0 0.0
    %256 = vmatpush1.msra.mxu0 0.0
    %257 = vmatprep.subr.mxu0 0.0
    %258 = vmatpush1.msra.mxu0 0.0
    %259 = vmatprep.subr.mxu0 0.0
    %260 = vmatpush1.msra.mxu0 0.0
    %261 = vmatprep.subr.mxu0 0.0
    %262 = vmatpush1.msra.mxu0 0.0
    %263 = vmatprep.subr.mxu0 0.0
    %264 = vmatpush1.msra.mxu0 0.0
    %265 = vmatprep.subr.mxu0 0.0
    %266 = vmatpush1.msra.mxu0 0.0
    %267 = vmatprep.subr.mxu0 0.0
    %268 = vmatpush1.msra.mxu0 0.0
    %269 = vmatprep.subr.mxu0 0.0
    %270 = vmatpush1.msra.mxu0 0.0
    %271 = vmatprep.subr.mxu0 0.0
    %272 = vmatpush1.msra.mxu0 0.0
    %273 = vmatprep.subr.mxu0 0.0
    %274 = vmatpush1.msra.mxu0 0.0
    %275 = vmatprep.subr.mxu0 0.0
    %276 = vmatpush1.msra.mxu0 0.0
    %277 = vmatprep.mubr.f32.mxu0 0.0
    %278 = vmatmul.mubr.f32.gmra.mrb[0].mxu0 %v188
    %v279 = vpop.f32.mrb[0].mxu0
    %v280 = vadd.f32 %v211, %v279
    %v281 = vpop.f32.mrb[0].mxu0
    %282 = vmatprep.mubr.f32.mxu0 0.0
    %283 = vmatmul.mubr.f32.gmra.mrb[0].mxu0 %v189
    %v284 = vpop.f32.mrb[0].mxu0
    %v285 = vadd.f32 %v211, %v284
    %v286 = vpop.f32.mrb[0].mxu0
    %287 = vdwg.mxu0
    %288 = vst.msk [vmem:[#allocation11] sm:$0xff] %vm98, %v280
    %289 = vst.msk [vmem:[#allocation11 + $0x8] sm:$0xff] %vm98, %v285
    // Predicated region
    $region42: #{tpu_custom_call.1} parent=1 // pred_check
      _
    $region43: #{tpu_custom_call.1} parent=1 // pred_check_branch
      %291 = sbr.rel (0) target = $region45
    $region44: #{tpu_custom_call.1} parent=1 // pred_region
      %s293 = ssub.s32 256, 256
      %294 = vsyncadd [#allocation4], %s293
      %s295 = sshll.u32 [#allocation11], 4
      %s296 = int_to_ptr.vmem [resolvable:$true] %s295
      %301 = dma.vmem_to_hbm [thread:$0]  %s296, 256, %s5, [#allocation4], 128, 128, 8
    $region45: #{tpu_custom_call.1} parent=1 // pred_fallthru
      _
    // Predicated region
    $region46: #{tpu_custom_call.1} parent=1 // pred_check
      _
    $region47: #{tpu_custom_call.1} parent=1 // pred_check_branch
      %303 = sbr.rel (0) target = $region49
    $region48: #{tpu_custom_call.1} parent=1 // pred_region
      %304 = dma.done [#allocation4], 256
    $region49: #{tpu_custom_call.1} parent=1 // pred_fallthru
      _
    %305 = vsyncpa [#allocation3], 1
    %306 = vsyncpa [#allocation6], 1
    %307 = vsyncpa [#allocation9], 1
    %308 = vsyncpa [#allocation4], 1

</llo_original>
